<compile_context>
chip_gen: v6e
topology: v6e:2x2x1
jax: 0.10.0
libtpu: 0.0.40
codegen_flags: <defaults>
</compile_context>

<pallas_src>
import jax
import jax.numpy as jnp
from jax.experimental import pallas as pl
from jax.experimental.pallas import tpu as pltpu


def _round_up(x, m):
    return ((x + m - 1) // m) * m


def _fusion_kernel(t_ref, i_ref, w1_ref, w2_ref, b_ref, o_ref):
    # Fused two-operand GEMM (+ bias + ReLU), accumulating in f32 on the MXU.
    acc = jnp.dot(t_ref[...], w1_ref[...], preferred_element_type=jnp.float32)
    acc += jnp.dot(i_ref[...], w2_ref[...], preferred_element_type=jnp.float32)
    o_ref[...] = jnp.maximum(acc + b_ref[...], 0.0).astype(o_ref.dtype)


def init_params(key, text_dim, image_dim, fusion_dim):
    """nn.Linear-style init: U(-1/sqrt(fan_in), 1/sqrt(fan_in)).

    Weights stored pre-transposed as (in_dim, out_dim) == torch weight.T.
    """
    ks = jax.random.split(key, 6)

    def lin(kw, kb, fan_in, fan_out):
        bound = 1.0 / jnp.sqrt(fan_in)
        w = jax.random.uniform(kw, (fan_in, fan_out), jnp.float32, -bound, bound)
        b = jax.random.uniform(kb, (1, fan_out), jnp.float32, -bound, bound)
        return w, b

    wt, bt = lin(ks[0], ks[1], text_dim, fusion_dim)
    wi, bi = lin(ks[2], ks[3], image_dim, fusion_dim)
    wf, bf = lin(ks[4], ks[5], 2 * fusion_dim, fusion_dim)
    return {"wt": wt, "bt": bt, "wi": wi, "bi": bi, "wf": wf, "bf": bf}


def fuse_params(params, fusion_dim):
    """Pre-compose the two linear stages (in f32), pad F to 128, cast to bf16."""
    F = fusion_dim
    wf_t = params["wf"][:F, :]   # acts on the text_proj half of the concat
    wf_i = params["wf"][F:, :]   # acts on the image_proj half

    # Compose in f32; casting to bf16 only afterwards avoids compounding
    # rounding through two matmuls.
    w1 = params["wt"] @ wf_t                                          # (Dt, F)
    w2 = params["wi"] @ wf_i                                          # (Di, F)
    b = params["bf"] + params["bt"] @ wf_t + params["bi"] @ wf_i      # (1, F)

    # Lane-pad the output dim to a multiple of 128 (lane-dense, unmasked vst).
    # Production fusion_dim is typically already 256-aligned for v6e/v7x MXUs.
    f_pad = _round_up(F, 128)
    if f_pad != F:
        w1 = jnp.pad(w1, ((0, 0), (0, f_pad - F)))
        w2 = jnp.pad(w2, ((0, 0), (0, f_pad - F)))
        b = jnp.pad(b, ((0, 0), (0, f_pad - F)))

    return {
        "w1": w1.astype(jnp.bfloat16),
        "w2": w2.astype(jnp.bfloat16),
        "b": b.astype(jnp.float32),      # tiny; keep f32 for the accumulator add
        "fusion_dim": F,
    }


def multimodal_fusion(text_features, image_features, fused_params):
    """text_features: (B, Dt), image_features: (B, Di) -> (B, F) float32."""
    B, Dt = text_features.shape
    _, Di = image_features.shape
    w1 = fused_params["w1"]          # (Dt, F_pad) bf16
    w2 = fused_params["w2"]          # (Di, F_pad) bf16
    b = fused_params["b"]            # (1,  F_pad) f32
    F = fused_params["fusion_dim"]
    F_pad = w1.shape[1]

    # bf16 activations halve HBM read traffic on a bandwidth-bound GEMM.
    # TODO(synk): have the upstream producer emit bf16 directly so this cast is
    # not a separate HBM pass.
    t = text_features.astype(jnp.bfloat16)
    im = image_features.astype(jnp.bfloat16)

    # F tile: largest 128-multiple tile that divides F_pad (<= 512).
    if F_pad % 512 == 0:
        TN = 512
    elif F_pad % 256 == 0:
        TN = 256
    else:
        TN = 128
    n_f = F_pad // TN

    # Batch tile: up to 512 rows (mem-bound roofline sweet spot); partial last
    # tile is fine — out-of-range rows are masked on writeback.
    TB = min(512, _round_up(B, 8))
    n_b = pl.cdiv(B, TB)
    # v7x has 2 TensorCores: ensure >= 2 parallel grid slices when possible.
    if n_f * n_b < 2 and B > 8:
        TB = _round_up(pl.cdiv(B, 2), 8)
        n_b = pl.cdiv(B, TB)

    grid = (n_f, n_b)  # F outermost -> each weight slab streams once total

    # Explicit scoped-VMEM budget: 2x(bf16 activation tiles) + 2x(f32 out tile)
    # + resident weights/bias, with generous headroom, clamped to [16, 64] MiB
    # so it is valid on v5e (16 MiB default scoped) through v7x (64 MiB/TC).
    resident_bytes = (Dt + Di) * TN * 2 + TN * 4
    stream_bytes = 2 * (TB * (Dt + Di) * 2 + TB * TN * 4)
    vmem_limit = min(max(2 * (resident_bytes + stream_bytes) + (4 << 20),
                         16 << 20), 64 << 20)

    cost = pl.CostEstimate(
        flops=2 * B * (Dt + Di) * F_pad,
        transcendentals=0,
        bytes_accessed=(2 * B * (Dt + Di)            # bf16 activations
                        + 2 * (Dt + Di) * F_pad      # bf16 weights
                        + 4 * F_pad                  # f32 bias
                        + 4 * B * F_pad),            # f32 output
    )

    def _specs(resident_kw):
        return [
            pl.BlockSpec((TB, Dt), lambda j, i: (i, 0)),           # text acts
            pl.BlockSpec((TB, Di), lambda j, i: (i, 0)),           # image acts
            pl.BlockSpec((Dt, TN), lambda j, i: (0, j), **resident_kw),
            pl.BlockSpec((Di, TN), lambda j, i: (0, j), **resident_kw),
            pl.BlockSpec((1, TN), lambda j, i: (0, j), **resident_kw),
        ]

    def _call(in_specs):
        return pl.pallas_call(
            _fusion_kernel,
            out_shape=jax.ShapeDtypeStruct((B, F_pad), jnp.float32),
            grid=grid,
            in_specs=in_specs,
            out_specs=pl.BlockSpec((TB, TN), lambda j, i: (i, j)),
            compiler_params=pltpu.CompilerParams(
                dimension_semantics=("parallel", "parallel"),
                vmem_limit_bytes=int(vmem_limit)),
            cost_estimate=cost,
        )(t, im, w1, w2, b)

    try:
        # Weights/bias never change block index within an F tile: single-buffer
        # them to save VMEM headroom for larger batch tiles.
        out = _call(_specs({"pipeline_mode": pl.Buffered(1)}))
    except Exception:
        # Older/newer jax may reject Buffered(1); default double-buffering is
        # only a VMEM cost, never a correctness issue.
        out = _call(_specs({}))

    return out[:, :F]


def reference(text_features, image_features, params, fusion_dim):
    """Original module semantics (f32, no pre-composition)."""
    tp = text_features @ params["wt"] + params["bt"]
    ip = image_features @ params["wi"] + params["bi"]
    cat = jnp.concatenate([tp, ip], axis=-1)
    return jnp.maximum(cat @ params["wf"] + params["bf"], 0.0)


if __name__ == "__main__":
    key = jax.random.PRNGKey(0)
    k_params, k_text, k_img = jax.random.split(key, 3)

    batch, text_dim, image_dim, fusion_dim = 8, 32, 48, 64

    params = init_params(k_params, text_dim, image_dim, fusion_dim)
    fused_params = fuse_params(params, fusion_dim)

    text_features = jax.random.normal(k_text, (batch, text_dim), jnp.float32)
    image_features = jax.random.normal(k_img, (batch, image_dim), jnp.float32)

    out = multimodal_fusion(text_features, image_features, fused_params)
    out = jax.block_until_ready(out)
    assert out.shape == (batch, fusion_dim)

    # Tight check: identical math path (bf16 operands, f32 accumulation) in XLA.
    t_bf = text_features.astype(jnp.bfloat16)
    i_bf = image_features.astype(jnp.bfloat16)
    ref_bf16 = jnp.maximum(
        jnp.dot(t_bf, fused_params["w1"][:, :fusion_dim],
                preferred_element_type=jnp.float32)
        + jnp.dot(i_bf, fused_params["w2"][:, :fusion_dim],
                  preferred_element_type=jnp.float32)
        + fused_params["b"][:, :fusion_dim],
        0.0)
    assert jnp.allclose(out, ref_bf16, atol=2e-3, rtol=2e-3), (
        float(jnp.max(jnp.abs(out - ref_bf16))))

    # Loose check against the original f32 module semantics (bf16 cast +
    # pre-composition change rounding).
    ref = reference(text_features, image_features, params, fusion_dim)
    assert jnp.allclose(out, ref, atol=3e-2, rtol=3e-2), (
        float(jnp.max(jnp.abs(out - ref))))

    print("KERNEL_OK")
</pallas_src>

<mosaic_0001>
module attributes {stable_mosaic.version = 11 : i64} {
  func.func @_fusion_kernel(%arg0: i32, %arg1: i32, %arg2: memref<8x32xbf16, #tpu.memory_space<vmem>>, %arg3: memref<8x48xbf16, #tpu.memory_space<vmem>>, %arg4: memref<32x128xbf16, #tpu.memory_space<vmem>>, %arg5: memref<48x128xbf16, #tpu.memory_space<vmem>>, %arg6: memref<1x128xf32, #tpu.memory_space<vmem>>, %arg7: memref<8x128xf32, #tpu.memory_space<vmem>>) attributes {dimension_semantics = [#tpu.dimension_semantics<parallel>, #tpu.dimension_semantics<parallel>], iteration_bounds = array<i64: 1, 1>, scalar_prefetch = 0 : i64, scratch_operands = 0 : i64, tpu.core_type = #tpu.core_type<tc>, window_params = [{transform_indices = @transform_0, window_bounds = array<i64: 8, 32>}, {transform_indices = @transform_1, window_bounds = array<i64: 8, 48>}, {pipeline_mode = #tpu.pipeline_mode<synchronous>, transform_indices = @transform_2, window_bounds = array<i64: 32, 128>}, {pipeline_mode = #tpu.pipeline_mode<synchronous>, transform_indices = @transform_3, window_bounds = array<i64: 48, 128>}, {pipeline_mode = #tpu.pipeline_mode<synchronous>, transform_indices = @transform_4, window_bounds = array<i64: 1, 128>}, {transform_indices = @transform_5, window_bounds = array<i64: 8, 128>}]} {
    %c0 = arith.constant 0 : index
    %c0_0 = arith.constant 0 : index
    %0 = vector.load %arg2[%c0, %c0_0] : memref<8x32xbf16, #tpu.memory_space<vmem>>, vector<8x32xbf16>
    %c0_1 = arith.constant 0 : index
    %c0_2 = arith.constant 0 : index
    %1 = vector.load %arg4[%c0_1, %c0_2] : memref<32x128xbf16, #tpu.memory_space<vmem>>, vector<32x128xbf16>
    %cst = arith.constant dense<0.000000e+00> : vector<8x128xf32>
    %2 = tpu.matmul %0, %1, %cst {dimension_numbers = #tpu.dot_dimension_numbers<[1], [0], [0], [1], [0, 0, 1, 1], [], []>} : vector<8x32xbf16>, vector<32x128xbf16>, vector<8x128xf32> -> vector<8x128xf32>
    %c0_3 = arith.constant 0 : index
    %c0_4 = arith.constant 0 : index
    %3 = vector.load %arg3[%c0_3, %c0_4] : memref<8x48xbf16, #tpu.memory_space<vmem>>, vector<8x48xbf16>
    %c0_5 = arith.constant 0 : index
    %c0_6 = arith.constant 0 : index
    %4 = vector.load %arg5[%c0_5, %c0_6] : memref<48x128xbf16, #tpu.memory_space<vmem>>, vector<48x128xbf16>
    %cst_7 = arith.constant dense<0.000000e+00> : vector<8x128xf32>
    %5 = tpu.matmul %3, %4, %cst_7 {dimension_numbers = #tpu.dot_dimension_numbers<[1], [0], [0], [1], [0, 0, 1, 1], [], []>} : vector<8x48xbf16>, vector<48x128xbf16>, vector<8x128xf32> -> vector<8x128xf32>
    %6 = arith.addf %2, %5 : vector<8x128xf32>
    %c0_8 = arith.constant 0 : index
    %c0_9 = arith.constant 0 : index
    %7 = vector.load %arg6[%c0_8, %c0_9] : memref<1x128xf32, #tpu.memory_space<vmem>>, vector<1x128xf32>
    %8 = vector.broadcast %7 : vector<1x128xf32> to vector<8x128xf32>
    %9 = arith.addf %6, %8 : vector<8x128xf32>
    %cst_10 = arith.constant 0.000000e+00 : f32
    %10 = vector.broadcast %cst_10 : f32 to vector<8x128xf32>
    %11 = arith.maximumf %9, %10 : vector<8x128xf32>
    %c0_11 = arith.constant 0 : index
    %c0_12 = arith.constant 0 : index
    %12 = vector.load %arg7[%c0_11, %c0_12] : memref<8x128xf32, #tpu.memory_space<vmem>>, vector<8x128xf32>
    tpu.vector_store %arg7[%c0_11, %c0_12], %11 {strides = array<i32>} : memref<8x128xf32, #tpu.memory_space<vmem>>, vector<8x128xf32>,
    return
  }
  func.func @transform_0(%arg0: i32, %arg1: i32) -> (i32, i32) {
    %c0_i32 = arith.constant 0 : i32
    %c0_i32_0 = arith.constant 0 : i32
    return %arg1, %c0_i32 : i32, i32
  }
  func.func @transform_1(%arg0: i32, %arg1: i32) -> (i32, i32) {
    %c0_i32 = arith.constant 0 : i32
    %c0_i32_0 = arith.constant 0 : i32
    return %arg1, %c0_i32 : i32, i32
  }
  func.func @transform_2(%arg0: i32, %arg1: i32) -> (i32, i32) {
    %c0_i32 = arith.constant 0 : i32
    %c0_i32_0 = arith.constant 0 : i32
    return %c0_i32, %arg0 : i32, i32
  }
  func.func @transform_3(%arg0: i32, %arg1: i32) -> (i32, i32) {
    %c0_i32 = arith.constant 0 : i32
    %c0_i32_0 = arith.constant 0 : i32
    return %c0_i32, %arg0 : i32, i32
  }
  func.func @transform_4(%arg0: i32, %arg1: i32) -> (i32, i32) {
    %c0_i32 = arith.constant 0 : i32
    %c0_i32_0 = arith.constant 0 : i32
    return %c0_i32, %arg0 : i32, i32
  }
  func.func @transform_5(%arg0: i32, %arg1: i32) -> (i32, i32) {
    %c0_i32 = arith.constant 0 : i32
    return %arg1, %arg0 : i32, i32
  }
}

module attributes {stable_mosaic.version = 11 : i64} {
  func.func @_fusion_kernel(%arg0: i32, %arg1: i32, %arg2: memref<8x32xbf16, #tpu.memory_space<vmem>>, %arg3: memref<8x48xbf16, #tpu.memory_space<vmem>>, %arg4: memref<32x128xbf16, #tpu.memory_space<vmem>>, %arg5: memref<48x128xbf16, #tpu.memory_space<vmem>>, %arg6: memref<1x128xf32, #tpu.memory_space<vmem>>, %arg7: memref<8x128xf32, #tpu.memory_space<vmem>>) attributes {dimension_semantics = [#tpu.dimension_semantics<parallel>, #tpu.dimension_semantics<parallel>], iteration_bounds = array<i64: 1, 1>, scalar_prefetch = 0 : i64, scratch_operands = 0 : i64, tpu.core_type = #tpu.core_type<tc>, window_params = [{transform_indices = @transform_0, window_bounds = array<i64: 8, 32>}, {transform_indices = @transform_1, window_bounds = array<i64: 8, 48>}, {transform_indices = @transform_2, window_bounds = array<i64: 32, 128>}, {transform_indices = @transform_3, window_bounds = array<i64: 48, 128>}, {transform_indices = @transform_4, window_bounds = array<i64: 1, 128>}, {transform_indices = @transform_5, window_bounds = array<i64: 8, 128>}]} {
    %c0 = arith.constant 0 : index
    %c0_0 = arith.constant 0 : index
    %0 = vector.load %arg2[%c0, %c0_0] : memref<8x32xbf16, #tpu.memory_space<vmem>>, vector<8x32xbf16>
    %c0_1 = arith.constant 0 : index
    %c0_2 = arith.constant 0 : index
    %1 = vector.load %arg4[%c0_1, %c0_2] : memref<32x128xbf16, #tpu.memory_space<vmem>>, vector<32x128xbf16>
    %cst = arith.constant dense<0.000000e+00> : vector<8x128xf32>
    %2 = tpu.matmul %0, %1, %cst {dimension_numbers = #tpu.dot_dimension_numbers<[1], [0], [0], [1], [0, 0, 1, 1], [], []>} : vector<8x32xbf16>, vector<32x128xbf16>, vector<8x128xf32> -> vector<8x128xf32>
    %c0_3 = arith.constant 0 : index
    %c0_4 = arith.constant 0 : index
    %3 = vector.load %arg3[%c0_3, %c0_4] : memref<8x48xbf16, #tpu.memory_space<vmem>>, vector<8x48xbf16>
    %c0_5 = arith.constant 0 : index
    %c0_6 = arith.constant 0 : index
    %4 = vector.load %arg5[%c0_5, %c0_6] : memref<48x128xbf16, #tpu.memory_space<vmem>>, vector<48x128xbf16>
    %cst_7 = arith.constant dense<0.000000e+00> : vector<8x128xf32>
    %5 = tpu.matmul %3, %4, %cst_7 {dimension_numbers = #tpu.dot_dimension_numbers<[1], [0], [0], [1], [0, 0, 1, 1], [], []>} : vector<8x48xbf16>, vector<48x128xbf16>, vector<8x128xf32> -> vector<8x128xf32>
    %6 = arith.addf %2, %5 : vector<8x128xf32>
    %c0_8 = arith.constant 0 : index
    %c0_9 = arith.constant 0 : index
    %7 = vector.load %arg6[%c0_8, %c0_9] : memref<1x128xf32, #tpu.memory_space<vmem>>, vector<1x128xf32>
    %8 = vector.broadcast %7 : vector<1x128xf32> to vector<8x128xf32>
    %9 = arith.addf %6, %8 : vector<8x128xf32>
    %cst_10 = arith.constant 0.000000e+00 : f32
    %10 = vector.broadcast %cst_10 : f32 to vector<8x128xf32>
    %11 = arith.maximumf %9, %10 : vector<8x128xf32>
    %c0_11 = arith.constant 0 : index
    %c0_12 = arith.constant 0 : index
    %12 = vector.load %arg7[%c0_11, %c0_12] : memref<8x128xf32, #tpu.memory_space<vmem>>, vector<8x128xf32>
    tpu.vector_store %arg7[%c0_11, %c0_12], %11 {strides = array<i32>} : memref<8x128xf32, #tpu.memory_space<vmem>>, vector<8x128xf32>,
    return
  }
  func.func @transform_0(%arg0: i32, %arg1: i32) -> (i32, i32) {
    %c0_i32 = arith.constant 0 : i32
    %c0_i32_0 = arith.constant 0 : i32
    return %arg1, %c0_i32 : i32, i32
  }
  func.func @transform_1(%arg0: i32, %arg1: i32) -> (i32, i32) {
    %c0_i32 = arith.constant 0 : i32
    %c0_i32_0 = arith.constant 0 : i32
    return %arg1, %c0_i32 : i32, i32
  }
  func.func @transform_2(%arg0: i32, %arg1: i32) -> (i32, i32) {
    %c0_i32 = arith.constant 0 : i32
    %c0_i32_0 = arith.constant 0 : i32
    return %c0_i32, %arg0 : i32, i32
  }
  func.func @transform_3(%arg0: i32, %arg1: i32) -> (i32, i32) {
    %c0_i32 = arith.constant 0 : i32
    %c0_i32_0 = arith.constant 0 : i32
    return %c0_i32, %arg0 : i32, i32
  }
  func.func @transform_4(%arg0: i32, %arg1: i32) -> (i32, i32) {
    %c0_i32 = arith.constant 0 : i32
    %c0_i32_0 = arith.constant 0 : i32
    return %c0_i32, %arg0 : i32, i32
  }
  func.func @transform_5(%arg0: i32, %arg1: i32) -> (i32, i32) {
    %c0_i32 = arith.constant 0 : i32
    return %arg1, %arg0 : i32, i32
  }
}

</mosaic_0001>

<llo_original>
// kernel: tpu_custom_call.1
$region0: #{tpu_custom_call.1}
  #allocation0 [shape = 'u32[]', space=smem, size = 0x4, offset = 0x4, fixed_abs, tag = 'smem constant byte address 0x4 - core index']
  #allocation1 [shape = 'u32[144,128]{1,0:T(1,128)}', space=vmem, size = 0x12000, scoped, tag = 'internal scratch']
  %s0 = inlined_call_operand.hbm [shape: bf16[8,32], index: 0, kind: input, shape index: {}]
  %s1 = inlined_call_operand.hbm [shape: bf16[8,48], index: 1, kind: input, shape index: {}]
  %s2 = inlined_call_operand.hbm [shape: bf16[32,128], index: 2, kind: input, shape index: {}]
  %s3 = inlined_call_operand.hbm [shape: bf16[48,128], index: 3, kind: input, shape index: {}]
  %s4 = inlined_call_operand.vmem [shape: f32[1,128], index: 4, kind: input, shape index: {}]
  %s5 = inlined_call_operand.hbm [shape: f32[8,128], index: 5, kind: output, shape index: {}]
  %s6 = sld [smem:[#allocation0]]
  $region46: #{tpu_custom_call.1} parent=0
    _
  %s8 = ssub.s32 1, %s6
  %s9 = scalar_select 0, %s8, %s6
  $region1: #{tpu_custom_call.1} parent=0
    #allocation2 [shape = 'u8[2048]{0}', space=vmem, size = 0x800, scoped, tag = 'input window, operand 0, single buffered']
    #allocation3 [shape = 's32[1]{0}', space=sflag, size = 0x4, scoped, tag = 'scoped memory for tpu_custom_call.1']
    #allocation4 [shape = 's32[1]{0}', space=sflag, size = 0x4, scoped, tag = 'scoped memory for tpu_custom_call.1']
    #allocation5 [shape = 'u8[2048]{0}', space=vmem, size = 0x800, scoped, tag = 'input window, operand 1, single buffered']
    #allocation6 [shape = 's32[1]{0}', space=sflag, size = 0x4, scoped, tag = 'scoped memory for tpu_custom_call.1']
    #allocation7 [shape = 'u8[8192]{0}', space=vmem, size = 0x2000, scoped, tag = 'input window, operand 2, single buffered']
    #allocation8 [shape = 'u8[12288]{0}', space=vmem, size = 0x3000, scoped, tag = 'input window, operand 3, single buffered']
    #allocation9 [shape = 's32[1]{0}', space=sflag, size = 0x4, scoped, tag = 'scoped memory for tpu_custom_call.1']
    #allocation10 [shape = 'u8[4096]{0}', space=vmem, size = 0x1000, scoped, tag = 'output window, operand 0, single buffered']
    %10 = vsyncpa [#allocation3], 0
    %11 = vsyncpa [#allocation6], 0
    %12 = vsyncpa [#allocation9], 0
    %13 = vsyncpa [#allocation4], 0
    // Predicated region
    $region2: #{tpu_custom_call.1} parent=1 // pred_check
      _
    $region3: #{tpu_custom_call.1} parent=1 // pred_check_branch
      %15 = sbr.rel (0) target = $region5
    $region4: #{tpu_custom_call.1} parent=1 // pred_region
      %s17 = ssub.s32 64, 64
      %18 = vsyncadd [#allocation3], %s17
      %s20 = sshll.u32 [#allocation2], 4
      %s21 = int_to_ptr.vmem [resolvable:$true] %s20
      %23 = dma.hbm_to_vmem [thread:$0]  %s0, 64, %s21, [#allocation3]
    $region5: #{tpu_custom_call.1} parent=1 // pred_fallthru
      _
    // Predicated region
    $region6: #{tpu_custom_call.1} parent=1 // pred_check
      _
    $region7: #{tpu_custom_call.1} parent=1 // pred_check_branch
      %25 = sbr.rel (0) target = $region9
    $region8: #{tpu_custom_call.1} parent=1 // pred_region
      %s27 = ssub.s32 64, 64
      %28 = vsyncadd [#allocation6], %s27
      %s30 = sshll.u32 [#allocation5], 4
      %s31 = int_to_ptr.vmem [resolvable:$true] %s30
      %33 = dma.hbm_to_vmem [thread:$0]  %s1, 64, %s31, [#allocation6]
    $region9: #{tpu_custom_call.1} parent=1 // pred_fallthru
      _
    // Predicated region
    $region10: #{tpu_custom_call.1} parent=1 // pred_check
      _
    $region11: #{tpu_custom_call.1} parent=1 // pred_check_branch
      %35 = sbr.rel (0) target = $region13
    $region12: #{tpu_custom_call.1} parent=1 // pred_region
      %s37 = ssub.s32 256, 256
      %38 = vsyncadd [#allocation6], %s37
      %s39 = sshll.u32 [#allocation7], 4
      %s40 = int_to_ptr.vmem [resolvable:$true] %s39
      %45 = dma.hbm_to_vmem [thread:$0]  %s2, 256, %s40, [#allocation6], 64, 64, 4
    $region13: #{tpu_custom_call.1} parent=1 // pred_fallthru
      _
    // Predicated region
    $region14: #{tpu_custom_call.1} parent=1 // pred_check
      _
    $region15: #{tpu_custom_call.1} parent=1 // pred_check_branch
      %47 = sbr.rel (0) target = $region17
    $region16: #{tpu_custom_call.1} parent=1 // pred_region
      %s49 = ssub.s32 384, 384
      %50 = vsyncadd [#allocation9], %s49
      %s51 = sshll.u32 [#allocation8], 4
      %s52 = int_to_ptr.vmem [resolvable:$true] %s51
      %57 = dma.hbm_to_vmem [thread:$0]  %s3, 384, %s52, [#allocation9], 64, 64, 4
    $region17: #{tpu_custom_call.1} parent=1 // pred_fallthru
      _
    // Predicated region
    $region18: #{tpu_custom_call.1} parent=1 // pred_check
      _
    $region19: #{tpu_custom_call.1} parent=1 // pred_check_branch
      %59 = sbr.rel (0) target = $region21
    $region20: #{tpu_custom_call.1} parent=1 // pred_region
      _
    $region21: #{tpu_custom_call.1} parent=1 // pred_fallthru
      _
    // Predicated region
    $region22: #{tpu_custom_call.1} parent=1 // pred_check
      _
    $region23: #{tpu_custom_call.1} parent=1 // pred_check_branch
      %61 = sbr.rel (0) target = $region25
    $region24: #{tpu_custom_call.1} parent=1 // pred_region
      %62 = dma.done [#allocation3], 64
    $region25: #{tpu_custom_call.1} parent=1 // pred_fallthru
      _
    // Predicated region
    $region26: #{tpu_custom_call.1} parent=1 // pred_check
      _
    $region27: #{tpu_custom_call.1} parent=1 // pred_check_branch
      %64 = sbr.rel (0) target = $region29
    $region28: #{tpu_custom_call.1} parent=1 // pred_region
      %65 = dma.done [#allocation6], 64
    $region29: #{tpu_custom_call.1} parent=1 // pred_fallthru
      _
    // Predicated region
    $region30: #{tpu_custom_call.1} parent=1 // pred_check
      _
    $region31: #{tpu_custom_call.1} parent=1 // pred_check_branch
      %67 = sbr.rel (0) target = $region33
    $region32: #{tpu_custom_call.1} parent=1 // pred_region
      %68 = dma.done [#allocation6], 256
    $region33: #{tpu_custom_call.1} parent=1 // pred_fallthru
      _
    // Predicated region
    $region34: #{tpu_custom_call.1} parent=1 // pred_check
      _
    $region35: #{tpu_custom_call.1} parent=1 // pred_check_branch
      %70 = sbr.rel (0) target = $region37
    $region36: #{tpu_custom_call.1} parent=1 // pred_region
      %71 = dma.done [#allocation9], 384
    $region37: #{tpu_custom_call.1} parent=1 // pred_fallthru
      _
    %v73 = vld [vmem:[#allocation2] sm:$0xf]
    %v74 = vld [vmem:[#allocation7] sm:$0xf]
    %v75 = vld [vmem:[#allocation7 + $0x4] sm:$0xf]
    %v76 = vld [vmem:[#allocation7 + $0x8] sm:$0xf]
    %v77 = vld [vmem:[#allocation7 + $0xc] sm:$0xf]
    %v78 = vld [vmem:[#allocation5] sm:$0xf]
    %v79 = vld [vmem:[#allocation8] sm:$0xf]
    %v80 = vld [vmem:[#allocation8 + $0x4] sm:$0xf]
    %v81 = vld [vmem:[#allocation8 + $0x8] sm:$0xf]
    %v82 = vld [vmem:[#allocation8 + $0xc] sm:$0xf]
    %v83 = vld [vmem:[#allocation8 + $0x10] sm:$0xf]
    %v84 = vld [vmem:[#allocation8 + $0x14] sm:$0xf]
    %v91 = vunpack.c.l.b16 %v79
    %v92 = vunpack.c.l.b16 %v80
    %v93 = vunpack.c.l.b16 %v81
    %v94 = vunpack.c.l.b16 %v82
    %v95 = vunpack.c.l.b16 %v83
    %v96 = vunpack.c.l.b16 %v84
    %v97 = vpack.c.b16 %v92, %v91
    %v98 = vpack.c.b16 %v94, %v93
    %v99 = vpack.c.b16 %v96, %v95
    %vm103 = vcmask 392192
    %v105 = vsel %vm103, %v78, 0
    %107 = vmatprep.subr.bf16.mxu0 0
    %108 = vmatpush1.bf16.msra.mxu0 0
    %109 = vmatprep.subr.bf16.mxu0 0
    %110 = vmatpush1.bf16.msra.mxu0 0
    %111 = vmatprep.subr.bf16.mxu0 0
    %112 = vmatpush1.bf16.msra.mxu0 0
    %113 = vmatprep.subr.bf16.mxu0 0
    %114 = vmatpush1.bf16.msra.mxu0 0
    %115 = vmatprep.subr.bf16.mxu0 0
    %116 = vmatpush1.bf16.msra.mxu0 0
    %117 = vmatprep.subr.bf16.mxu0 0
    %118 = vmatpush1.bf16.msra.mxu0 %v99
    %119 = vmatprep.subr.bf16.mxu0 0
    %120 = vmatpush1.bf16.msra.mxu0 %v98
    %121 = vmatprep.subr.bf16.mxu0 0
    %122 = vmatpush1.bf16.msra.mxu0 %v97
    %123 = vmatprep.subr.bf16.mxu0 0
    %124 = vmatpush2.bf16.msra.mxu0 0
    %125 = vmatprep.subr.bf16.mxu0 0
    %126 = vmatpush2.bf16.msra.mxu0 0
    %127 = vmatprep.subr.bf16.mxu0 0
    %128 = vmatpush2.bf16.msra.mxu0 0
    %129 = vmatprep.subr.bf16.mxu0 0
    %130 = vmatpush2.bf16.msra.mxu0 0
    %131 = vmatprep.subr.bf16.mxu0 0
    %132 = vmatpush2.bf16.msra.mxu0 0
    %133 = vmatprep.subr.bf16.mxu0 0
    %134 = vmatpush2.bf16.msra.mxu0 0
    %135 = vmatprep.subr.bf16.mxu0 0
    %136 = vmatpush2.bf16.msra.mxu0 0
    %137 = vmatprep.subr.bf16.mxu0 0
    %138 = vmatpush2.bf16.msra.mxu0 0
    %139 = vmatprep.mubr.bf16.mxu0 0
    %140 = vmatmul.mubr.bf16.gmra.mxu0 %v105
    %v141 = vpop.f32.mrf.mxu0
    %v142 = vadd.f32 0.0, %v141
    %v143 = vpop.f32.mrf.mxu0
    %v144 = vpop.f32.mrf.mxu0
    %v145 = vpop.f32.mrf.mxu0
    %146 = vdwg.mxu0
    %v151 = vunpack.c.l.b16 %v74
    %v152 = vunpack.c.l.b16 %v75
    %v153 = vunpack.c.l.b16 %v76
    %v154 = vunpack.c.l.b16 %v77
    %v155 = vpack.c.b16 %v152, %v151
    %v156 = vpack.c.b16 %v154, %v153
    %vm159 = vcmask 261120
    %v161 = vsel %vm159, %v73, 0
    %163 = vmatprep.subr.bf16.mxu0 0
    %164 = vmatpush1.bf16.msra.mxu0 0
    %165 = vmatprep.subr.bf16.mxu0 0
    %166 = vmatpush1.bf16.msra.mxu0 0
    %167 = vmatprep.subr.bf16.mxu0 0
    %168 = vmatpush1.bf16.msra.mxu0 0
    %169 = vmatprep.subr.bf16.mxu0 0
    %170 = vmatpush1.bf16.msra.mxu0 0
    %171 = vmatprep.subr.bf16.mxu0 0
    %172 = vmatpush1.bf16.msra.mxu0 0
    %173 = vmatprep.subr.bf16.mxu0 0
    %174 = vmatpush1.bf16.msra.mxu0 0
    %175 = vmatprep.subr.bf16.mxu0 0
    %176 = vmatpush1.bf16.msra.mxu0 %v156
    %177 = vmatprep.subr.bf16.mxu0 0
    %178 = vmatpush1.bf16.msra.mxu0 %v155
    %179 = vmatprep.subr.bf16.mxu0 0
    %180 = vmatpush2.bf16.msra.mxu0 0
    %181 = vmatprep.subr.bf16.mxu0 0
    %182 = vmatpush2.bf16.msra.mxu0 0
    %183 = vmatprep.subr.bf16.mxu0 0
    %184 = vmatpush2.bf16.msra.mxu0 0
    %185 = vmatprep.subr.bf16.mxu0 0
    %186 = vmatpush2.bf16.msra.mxu0 0
    %187 = vmatprep.subr.bf16.mxu0 0
    %188 = vmatpush2.bf16.msra.mxu0 0
    %189 = vmatprep.subr.bf16.mxu0 0
    %190 = vmatpush2.bf16.msra.mxu0 0
    %191 = vmatprep.subr.bf16.mxu0 0
    %192 = vmatpush2.bf16.msra.mxu0 0
    %193 = vmatprep.subr.bf16.mxu0 0
    %194 = vmatpush2.bf16.msra.mxu0 0
    %195 = vmatprep.mubr.bf16.mxu0 0
    %196 = vmatmul.mubr.bf16.gmra.mxu0 %v161
    %v197 = vpop.f32.mrf.mxu0
    %v198 = vadd.f32 %v142, %v197
    %v199 = vpop.f32.mrf.mxu0
    %v200 = vpop.f32.mrf.mxu0
    %v201 = vpop.f32.mrf.mxu0
    %202 = vdwg.mxu0
    %v203 = vld [vmem:[%s4] sm:$0x1]
    %v205 = vlaneseq
    %v206 = vshrl.u32 %v205, 7
    %v207 = vsub.s32 0, %v206
    %v208 = vrot.slane %v203, %v207
    %v210 = vadd.f32 %v198, %v208
    %v211 = vmax.f32 %v210, 0.0
    %212 = vst [vmem:[#allocation10] sm:$0xff] %v211
    // Predicated region
    $region38: #{tpu_custom_call.1} parent=1 // pred_check
      _
    $region39: #{tpu_custom_call.1} parent=1 // pred_check_branch
      %214 = sbr.rel (0) target = $region41
    $region40: #{tpu_custom_call.1} parent=1 // pred_region
      %s216 = ssub.s32 128, 128
      %217 = vsyncadd [#allocation4], %s216
      %s219 = sshll.u32 [#allocation10], 4
      %s220 = int_to_ptr.vmem [resolvable:$true] %s219
      %222 = dma.vmem_to_hbm [thread:$0]  %s220, 128, %s5, [#allocation4]
    $region41: #{tpu_custom_call.1} parent=1 // pred_fallthru
      _
    // Predicated region
    $region42: #{tpu_custom_call.1} parent=1 // pred_check
      _
    $region43: #{tpu_custom_call.1} parent=1 // pred_check_branch
      %224 = sbr.rel (0) target = $region45
    $region44: #{tpu_custom_call.1} parent=1 // pred_region
      %225 = dma.done [#allocation4], 128
    $region45: #{tpu_custom_call.1} parent=1 // pred_fallthru
      _
    %226 = vsyncpa [#allocation3], 1
    %227 = vsyncpa [#allocation6], 1
    %228 = vsyncpa [#allocation9], 1
    %229 = vsyncpa [#allocation4], 1

// kernel: tpu_custom_call.1
$region0: #{tpu_custom_call.1}
  #allocation0 [shape = 'u32[]', space=smem, size = 0x4, offset = 0x4, fixed_abs, tag = 'smem constant byte address 0x4 - core index']
  #allocation1 [shape = 'u32[144,128]{1,0:T(1,128)}', space=vmem, size = 0x12000, scoped, tag = 'internal scratch']
  %s0 = inlined_call_operand.hbm [shape: bf16[8,32], index: 0, kind: input, shape index: {}]
  %s1 = inlined_call_operand.hbm [shape: bf16[8,48], index: 1, kind: input, shape index: {}]
  %s2 = inlined_call_operand.hbm [shape: bf16[32,128], index: 2, kind: input, shape index: {}]
  %s3 = inlined_call_operand.hbm [shape: bf16[48,128], index: 3, kind: input, shape index: {}]
  %s4 = inlined_call_operand.vmem [shape: f32[1,128], index: 4, kind: input, shape index: {}]
  %s5 = inlined_call_operand.hbm [shape: f32[8,128], index: 5, kind: output, shape index: {}]
  %s6 = sld [smem:[#allocation0]]
  $region46: #{tpu_custom_call.1} parent=0
    _
  %s8 = ssub.s32 1, %s6
  %s9 = scalar_select 0, %s8, %s6
  $region1: #{tpu_custom_call.1} parent=0
    #allocation2 [shape = 'u8[2048]{0}', space=vmem, size = 0x800, scoped, tag = 'input window, operand 0, single buffered']
    #allocation3 [shape = 's32[1]{0}', space=sflag, size = 0x4, scoped, tag = 'scoped memory for tpu_custom_call.1']
    #allocation4 [shape = 's32[1]{0}', space=sflag, size = 0x4, scoped, tag = 'scoped memory for tpu_custom_call.1']
    #allocation5 [shape = 'u8[2048]{0}', space=vmem, size = 0x800, scoped, tag = 'input window, operand 1, single buffered']
    #allocation6 [shape = 's32[1]{0}', space=sflag, size = 0x4, scoped, tag = 'scoped memory for tpu_custom_call.1']
    #allocation7 [shape = 'u8[8192]{0}', space=vmem, size = 0x2000, scoped, tag = 'input window, operand 2, single buffered']
    #allocation8 [shape = 'u8[12288]{0}', space=vmem, size = 0x3000, scoped, tag = 'input window, operand 3, single buffered']
    #allocation9 [shape = 's32[1]{0}', space=sflag, size = 0x4, scoped, tag = 'scoped memory for tpu_custom_call.1']
    #allocation10 [shape = 'u8[4096]{0}', space=vmem, size = 0x1000, scoped, tag = 'output window, operand 0, single buffered']
    %10 = vsyncpa [#allocation3], 0
    %11 = vsyncpa [#allocation6], 0
    %12 = vsyncpa [#allocation9], 0
    %13 = vsyncpa [#allocation4], 0
    // Predicated region
    $region2: #{tpu_custom_call.1} parent=1 // pred_check
      _
    $region3: #{tpu_custom_call.1} parent=1 // pred_check_branch
      %15 = sbr.rel (0) target = $region5
    $region4: #{tpu_custom_call.1} parent=1 // pred_region
      %s17 = ssub.s32 64, 64
      %18 = vsyncadd [#allocation3], %s17
      %s20 = sshll.u32 [#allocation2], 4
      %s21 = int_to_ptr.vmem [resolvable:$true] %s20
      %23 = dma.hbm_to_vmem [thread:$0]  %s0, 64, %s21, [#allocation3]
    $region5: #{tpu_custom_call.1} parent=1 // pred_fallthru
      _
    // Predicated region
    $region6: #{tpu_custom_call.1} parent=1 // pred_check
      _
    $region7: #{tpu_custom_call.1} parent=1 // pred_check_branch
      %25 = sbr.rel (0) target = $region9
    $region8: #{tpu_custom_call.1} parent=1 // pred_region
      %s27 = ssub.s32 64, 64
      %28 = vsyncadd [#allocation6], %s27
      %s30 = sshll.u32 [#allocation5], 4
      %s31 = int_to_ptr.vmem [resolvable:$true] %s30
      %33 = dma.hbm_to_vmem [thread:$0]  %s1, 64, %s31, [#allocation6]
    $region9: #{tpu_custom_call.1} parent=1 // pred_fallthru
      _
    // Predicated region
    $region10: #{tpu_custom_call.1} parent=1 // pred_check
      _
    $region11: #{tpu_custom_call.1} parent=1 // pred_check_branch
      %35 = sbr.rel (0) target = $region13
    $region12: #{tpu_custom_call.1} parent=1 // pred_region
      %s37 = ssub.s32 256, 256
      %38 = vsyncadd [#allocation6], %s37
      %s39 = sshll.u32 [#allocation7], 4
      %s40 = int_to_ptr.vmem [resolvable:$true] %s39
      %45 = dma.hbm_to_vmem [thread:$0]  %s2, 256, %s40, [#allocation6], 64, 64, 4
    $region13: #{tpu_custom_call.1} parent=1 // pred_fallthru
      _
    // Predicated region
    $region14: #{tpu_custom_call.1} parent=1 // pred_check
      _
    $region15: #{tpu_custom_call.1} parent=1 // pred_check_branch
      %47 = sbr.rel (0) target = $region17
    $region16: #{tpu_custom_call.1} parent=1 // pred_region
      %s49 = ssub.s32 384, 384
      %50 = vsyncadd [#allocation9], %s49
      %s51 = sshll.u32 [#allocation8], 4
      %s52 = int_to_ptr.vmem [resolvable:$true] %s51
      %57 = dma.hbm_to_vmem [thread:$0]  %s3, 384, %s52, [#allocation9], 64, 64, 4
    $region17: #{tpu_custom_call.1} parent=1 // pred_fallthru
      _
    // Predicated region
    $region18: #{tpu_custom_call.1} parent=1 // pred_check
      _
    $region19: #{tpu_custom_call.1} parent=1 // pred_check_branch
      %59 = sbr.rel (0) target = $region21
    $region20: #{tpu_custom_call.1} parent=1 // pred_region
      _
    $region21: #{tpu_custom_call.1} parent=1 // pred_fallthru
      _
    // Predicated region
    $region22: #{tpu_custom_call.1} parent=1 // pred_check
      _
    $region23: #{tpu_custom_call.1} parent=1 // pred_check_branch
      %61 = sbr.rel (0) target = $region25
    $region24: #{tpu_custom_call.1} parent=1 // pred_region
      %62 = dma.done [#allocation3], 64
    $region25: #{tpu_custom_call.1} parent=1 // pred_fallthru
      _
    // Predicated region
    $region26: #{tpu_custom_call.1} parent=1 // pred_check
      _
    $region27: #{tpu_custom_call.1} parent=1 // pred_check_branch
      %64 = sbr.rel (0) target = $region29
    $region28: #{tpu_custom_call.1} parent=1 // pred_region
      %65 = dma.done [#allocation6], 64
    $region29: #{tpu_custom_call.1} parent=1 // pred_fallthru
      _
    // Predicated region
    $region30: #{tpu_custom_call.1} parent=1 // pred_check
      _
    $region31: #{tpu_custom_call.1} parent=1 // pred_check_branch
      %67 = sbr.rel (0) target = $region33
    $region32: #{tpu_custom_call.1} parent=1 // pred_region
      %68 = dma.done [#allocation6], 256
    $region33: #{tpu_custom_call.1} parent=1 // pred_fallthru
      _
    // Predicated region
    $region34: #{tpu_custom_call.1} parent=1 // pred_check
      _
    $region35: #{tpu_custom_call.1} parent=1 // pred_check_branch
      %70 = sbr.rel (0) target = $region37
    $region36: #{tpu_custom_call.1} parent=1 // pred_region
      %71 = dma.done [#allocation9], 384
    $region37: #{tpu_custom_call.1} parent=1 // pred_fallthru
      _
    %v73 = vld [vmem:[#allocation2] sm:$0xf]
    %v74 = vld [vmem:[#allocation7] sm:$0xf]
    %v75 = vld [vmem:[#allocation7 + $0x4] sm:$0xf]
    %v76 = vld [vmem:[#allocation7 + $0x8] sm:$0xf]
    %v77 = vld [vmem:[#allocation7 + $0xc] sm:$0xf]
    %v78 = vld [vmem:[#allocation5] sm:$0xf]
    %v79 = vld [vmem:[#allocation8] sm:$0xf]
    %v80 = vld [vmem:[#allocation8 + $0x4] sm:$0xf]
    %v81 = vld [vmem:[#allocation8 + $0x8] sm:$0xf]
    %v82 = vld [vmem:[#allocation8 + $0xc] sm:$0xf]
    %v83 = vld [vmem:[#allocation8 + $0x10] sm:$0xf]
    %v84 = vld [vmem:[#allocation8 + $0x14] sm:$0xf]
    %v91 = vunpack.c.l.b16 %v79
    %v92 = vunpack.c.l.b16 %v80
    %v93 = vunpack.c.l.b16 %v81
    %v94 = vunpack.c.l.b16 %v82
    %v95 = vunpack.c.l.b16 %v83
    %v96 = vunpack.c.l.b16 %v84
    %v97 = vpack.c.b16 %v92, %v91
    %v98 = vpack.c.b16 %v94, %v93
    %v99 = vpack.c.b16 %v96, %v95
    %vm103 = vcmask 392192
    %v105 = vsel %vm103, %v78, 0
    %107 = vmatprep.subr.bf16.mxu0 0
    %108 = vmatpush1.bf16.msra.mxu0 0
    %109 = vmatprep.subr.bf16.mxu0 0
    %110 = vmatpush1.bf16.msra.mxu0 0
    %111 = vmatprep.subr.bf16.mxu0 0
    %112 = vmatpush1.bf16.msra.mxu0 0
    %113 = vmatprep.subr.bf16.mxu0 0
    %114 = vmatpush1.bf16.msra.mxu0 0
    %115 = vmatprep.subr.bf16.mxu0 0
    %116 = vmatpush1.bf16.msra.mxu0 0
    %117 = vmatprep.subr.bf16.mxu0 0
    %118 = vmatpush1.bf16.msra.mxu0 %v99
    %119 = vmatprep.subr.bf16.mxu0 0
    %120 = vmatpush1.bf16.msra.mxu0 %v98
    %121 = vmatprep.subr.bf16.mxu0 0
    %122 = vmatpush1.bf16.msra.mxu0 %v97
    %123 = vmatprep.subr.bf16.mxu0 0
    %124 = vmatpush2.bf16.msra.mxu0 0
    %125 = vmatprep.subr.bf16.mxu0 0
    %126 = vmatpush2.bf16.msra.mxu0 0
    %127 = vmatprep.subr.bf16.mxu0 0
    %128 = vmatpush2.bf16.msra.mxu0 0
    %129 = vmatprep.subr.bf16.mxu0 0
    %130 = vmatpush2.bf16.msra.mxu0 0
    %131 = vmatprep.subr.bf16.mxu0 0
    %132 = vmatpush2.bf16.msra.mxu0 0
    %133 = vmatprep.subr.bf16.mxu0 0
    %134 = vmatpush2.bf16.msra.mxu0 0
    %135 = vmatprep.subr.bf16.mxu0 0
    %136 = vmatpush2.bf16.msra.mxu0 0
    %137 = vmatprep.subr.bf16.mxu0 0
    %138 = vmatpush2.bf16.msra.mxu0 0
    %139 = vmatprep.mubr.bf16.mxu0 0
    %140 = vmatmul.mubr.bf16.gmra.mxu0 %v105
    %v141 = vpop.f32.mrf.mxu0
    %v142 = vadd.f32 0.0, %v141
    %v143 = vpop.f32.mrf.mxu0
    %v144 = vpop.f32.mrf.mxu0
    %v145 = vpop.f32.mrf.mxu0
    %146 = vdwg.mxu0
    %v151 = vunpack.c.l.b16 %v74
    %v152 = vunpack.c.l.b16 %v75
    %v153 = vunpack.c.l.b16 %v76
    %v154 = vunpack.c.l.b16 %v77
    %v155 = vpack.c.b16 %v152, %v151
    %v156 = vpack.c.b16 %v154, %v153
    %vm159 = vcmask 261120
    %v161 = vsel %vm159, %v73, 0
    %163 = vmatprep.subr.bf16.mxu0 0
    %164 = vmatpush1.bf16.msra.mxu0 0
    %165 = vmatprep.subr.bf16.mxu0 0
    %166 = vmatpush1.bf16.msra.mxu0 0
    %167 = vmatprep.subr.bf16.mxu0 0
    %168 = vmatpush1.bf16.msra.mxu0 0
    %169 = vmatprep.subr.bf16.mxu0 0
    %170 = vmatpush1.bf16.msra.mxu0 0
    %171 = vmatprep.subr.bf16.mxu0 0
    %172 = vmatpush1.bf16.msra.mxu0 0
    %173 = vmatprep.subr.bf16.mxu0 0
    %174 = vmatpush1.bf16.msra.mxu0 0
    %175 = vmatprep.subr.bf16.mxu0 0
    %176 = vmatpush1.bf16.msra.mxu0 %v156
    %177 = vmatprep.subr.bf16.mxu0 0
    %178 = vmatpush1.bf16.msra.mxu0 %v155
    %179 = vmatprep.subr.bf16.mxu0 0
    %180 = vmatpush2.bf16.msra.mxu0 0
    %181 = vmatprep.subr.bf16.mxu0 0
    %182 = vmatpush2.bf16.msra.mxu0 0
    %183 = vmatprep.subr.bf16.mxu0 0
    %184 = vmatpush2.bf16.msra.mxu0 0
    %185 = vmatprep.subr.bf16.mxu0 0
    %186 = vmatpush2.bf16.msra.mxu0 0
    %187 = vmatprep.subr.bf16.mxu0 0
    %188 = vmatpush2.bf16.msra.mxu0 0
    %189 = vmatprep.subr.bf16.mxu0 0
    %190 = vmatpush2.bf16.msra.mxu0 0
    %191 = vmatprep.subr.bf16.mxu0 0
    %192 = vmatpush2.bf16.msra.mxu0 0
    %193 = vmatprep.subr.bf16.mxu0 0
    %194 = vmatpush2.bf16.msra.mxu0 0
    %195 = vmatprep.mubr.bf16.mxu0 0
    %196 = vmatmul.mubr.bf16.gmra.mxu0 %v161
    %v197 = vpop.f32.mrf.mxu0
    %v198 = vadd.f32 %v142, %v197
    %v199 = vpop.f32.mrf.mxu0
    %v200 = vpop.f32.mrf.mxu0
    %v201 = vpop.f32.mrf.mxu0
    %202 = vdwg.mxu0
    %v203 = vld [vmem:[%s4] sm:$0x1]
    %v205 = vlaneseq
    %v206 = vshrl.u32 %v205, 7
    %v207 = vsub.s32 0, %v206
    %v208 = vrot.slane %v203, %v207
    %v210 = vadd.f32 %v198, %v208
    %v211 = vmax.f32 %v210, 0.0
    %212 = vst [vmem:[#allocation10] sm:$0xff] %v211
    // Predicated region
    $region38: #{tpu_custom_call.1} parent=1 // pred_check
      _
    $region39: #{tpu_custom_call.1} parent=1 // pred_check_branch
      %214 = sbr.rel (0) target = $region41
    $region40: #{tpu_custom_call.1} parent=1 // pred_region
      %s216 = ssub.s32 128, 128
      %217 = vsyncadd [#allocation4], %s216
      %s219 = sshll.u32 [#allocation10], 4
      %s220 = int_to_ptr.vmem [resolvable:$true] %s219
      %222 = dma.vmem_to_hbm [thread:$0]  %s220, 128, %s5, [#allocation4]
    $region41: #{tpu_custom_call.1} parent=1 // pred_fallthru
      _
    // Predicated region
    $region42: #{tpu_custom_call.1} parent=1 // pred_check
      _
    $region43: #{tpu_custom_call.1} parent=1 // pred_check_branch
      %224 = sbr.rel (0) target = $region45
    $region44: #{tpu_custom_call.1} parent=1 // pred_region
      %225 = dma.done [#allocation4], 128
    $region45: #{tpu_custom_call.1} parent=1 // pred_fallthru
      _
    %226 = vsyncpa [#allocation3], 1
    %227 = vsyncpa [#allocation6], 1
    %228 = vsyncpa [#allocation9], 1
    %229 = vsyncpa [#allocation4], 1

</llo_original>
